<compile_context>
chip_gen: v7x
topology: tpu7x:2x2x1
jax: 0.10.0
libtpu: 0.0.40
codegen_flags: <defaults>
</compile_context>

<pallas_src>
import functools

import jax
import jax.numpy as jnp
from jax.experimental import pallas as pl
from jax.experimental.pallas import tpu as pltpu


# --------------------------------------------------------------------------- #
# Kernels
# --------------------------------------------------------------------------- #
def _finalize_store(pooled_f32, w_ref, b_ref, o_ref):
    """pooled_f32: (tn, C) f32 global-average -> logits -> o_ref (tn, 1, ncp).

    Mixed precision note: the f32 accumulator protects the pooling; the pooled
    activations are cast to the weight dtype for the MXU, and the matmul itself
    accumulates in f32 (preferred_element_type).
    """
    logits = jnp.dot(pooled_f32.astype(w_ref.dtype), w_ref[...],
                     preferred_element_type=jnp.float32)
    logits = logits + b_ref[...].astype(jnp.float32)          # (tn, ncp)
    o_ref[...] = logits[:, None, :].astype(o_ref.dtype)        # (tn, 1, ncp)


def _pool_linear_single_step_kernel(x_ref, w_ref, b_ref, o_ref, *, inv_hw):
    """Common case: whole spatial extent in one block.

    x_ref: (tn, C, HW)  native dtype, HW on lanes
    w_ref: (C, ncp)     weight^T, classes padded to a 128 multiple
    b_ref: (1, ncp)     bias, zero-padded
    o_ref: (tn, 1, ncp) padded logits
    """
    pooled = jnp.sum(x_ref[...], axis=-1, dtype=jnp.float32) * inv_hw   # (tn, C)
    _finalize_store(pooled, w_ref, b_ref, o_ref)


def _pool_linear_accum_kernel(x_ref, w_ref, b_ref, o_ref, acc_ref, *,
                              inv_hw, acc_lanes):
    """Spatial axis tiled across the (last) reduction grid axis.

    acc_ref: (tn, C, acc_lanes) f32 scratch.  Per-step work is pure VALU:
    lane-aligned slabs of the x tile are added into acc.  The single cross-lane
    (XLU) collapse, the mean scaling, the MXU matmul and the bias add happen
    only on the last reduction step.
    """
    j = pl.program_id(1)

    @pl.when(j == 0)
    def _():
        acc_ref[...] = jnp.zeros_like(acc_ref)

    thw = x_ref.shape[2]
    n_full, rem = divmod(thw, acc_lanes)
    for k in range(n_full):                      # static unroll, lane-aligned slabs
        acc_ref[...] += x_ref[:, :, k * acc_lanes:(k + 1) * acc_lanes].astype(
            jnp.float32)
    if rem:                                      # only for odd tile widths
        acc_ref[:, :, :rem] += x_ref[:, :, n_full * acc_lanes:].astype(jnp.float32)

    @pl.when(j == pl.num_programs(1) - 1)
    def _():
        pooled = jnp.sum(acc_ref[...], axis=-1) * inv_hw        # one XLU collapse
        _finalize_store(pooled, w_ref, b_ref, o_ref)


# --------------------------------------------------------------------------- #
# Wrapper
# --------------------------------------------------------------------------- #
def _round_up(n, m):
    return (n + m - 1) // m * m


def _largest_divisor_leq(n, cap):
    cap = max(1, min(n, cap))
    for d in range(cap, 0, -1):
        if n % d == 0:
            return d
    return 1


def classifier_head(x_nchw, weight, bias, *, x_block_bytes=None):
    """AdaptiveAvgPool2d((1,1)) + flatten + Linear, fused into one Pallas kernel.

    x_nchw: (N, C, H, W)  -- consumed in native NCHW layout (no transpose).
    weight: (num_classes, C); bias: (num_classes,).
    """
    N, C, H, W = x_nchw.shape
    num_classes = weight.shape[0]
    HW = H * W
    itemsize = jnp.dtype(x_nchw.dtype).itemsize
    out_dtype = jnp.promote_types(x_nchw.dtype, weight.dtype)

    # Free view (no data movement): (N, C, H, W) -> (N, C, HW).
    x = x_nchw.reshape(N, C, HW)

    # Pad classes to a lane multiple -> lane-dense MXU tiles + unmasked stores.
    ncp = _round_up(num_classes, 128)
    w_t = jnp.zeros((C, ncp), weight.dtype).at[:, :num_classes].set(weight.T)
    b_pad = jnp.zeros((1, ncp), bias.dtype).at[0, :num_classes].set(bias)

    # ---- generation-aware VMEM budgeting -------------------------------------
    try:
        vmem_cap = int(pltpu.get_tpu_info().vmem_capacity_bytes)
    except Exception:
        vmem_cap = 64 * 1024 * 1024            # conservative (v7x-sized) fallback
    if x_block_bytes is None:
        # ~10.7 MiB/buffer on v7x (64 MiB VMEM), 16 MiB/buffer on v5e/v6e (128 MiB).
        x_block_bytes = min(16 * 1024 * 1024, vmem_cap // 6)

    c_sub = _round_up(C, 8)                    # sublane padding of the C axis

    def x_bytes(tn, thw):                      # physical VMEM bytes of one x block
        return tn * c_sub * _round_up(thw, 128) * itemsize

    # ---- spatial (reduction) tiling -------------------------------------------
    # Prefer the whole spatial extent in one block (no cross-step accumulator,
    # exactly one lane collapse per batch tile).  Only tile HW when a single
    # sample's (C, HW) slab overflows the block budget, and then only with a
    # lane-aligned (multiple-of-128) divisor.
    if x_bytes(1, HW) <= x_block_bytes:
        thw = HW
    else:
        thw = None
        cap = max(128, (x_block_bytes // (c_sub * itemsize)) // 128 * 128)
        for cand in range(min(cap, (HW // 128) * 128), 0, -128):
            if HW % cand == 0:
                thw = cand
                break
        if thw is None:
            # No lane-aligned divisor: take the full extent with tn=1 and raise
            # the VMEM limit to match (never silently keep a stale budget).
            # TODO(synk): zero-pad HW to a 128 multiple in the producer if a
            # huge, odd spatial extent ever shows up at a classifier head.
            thw = HW
    hw_steps = HW // thw

    # ---- batch (parallel) tiling -----------------------------------------------
    acc_lanes = min(128, thw)
    acc_bytes_per_n = c_sub * 128 * 4 if hw_steps > 1 else 0
    tn_cap = max(1, x_block_bytes // max(1, x_bytes(1, thw)))
    if acc_bytes_per_n:
        tn_cap = min(tn_cap, max(1, (4 * 1024 * 1024) // acc_bytes_per_n))
    tn_cap = min(tn_cap, 256)
    if N >= 2:
        # Keep >= 2 blocks on the parallel axis so both v7x TensorCores get work.
        tn_cap = min(tn_cap, max(1, N // 2))
    tn = _largest_divisor_leq(N, tn_cap)

    grid = (N // tn, hw_steps)                 # reduction axis last

    # ---- kernel + scratch --------------------------------------------------------
    inv_hw = 1.0 / float(HW)
    if hw_steps == 1:
        kernel = functools.partial(_pool_linear_single_step_kernel, inv_hw=inv_hw)
        scratch = []
    else:
        kernel = functools.partial(_pool_linear_accum_kernel, inv_hw=inv_hw,
                                   acc_lanes=acc_lanes)
        scratch = [pltpu.VMEM((tn, C, acc_lanes), jnp.float32)]

    # ---- VMEM limit sized to what is actually used -------------------------------
    need = (2 * x_bytes(tn, thw)                                    # x, double-buffered
            + c_sub * ncp * jnp.dtype(weight.dtype).itemsize        # w (single buffer)
            + 8 * ncp * jnp.dtype(bias.dtype).itemsize              # bias
            + 2 * tn * 8 * ncp * jnp.dtype(out_dtype).itemsize      # out blocks
            + tn * acc_bytes_per_n                                   # accumulator
            + (2 << 20))                                             # margin
    vmem_limit = int(min(max(int(need * 1.2), 32 << 20), int(vmem_cap * 0.9)))

    def build(single_buffer_consts):
        const_kw = {}
        if single_buffer_consts:
            # Constant block index -> one resident buffer is enough.
            const_kw = dict(pipeline_mode=pl.Buffered(buffer_count=1))
        in_specs = [
            pl.BlockSpec((tn, C, thw), lambda i, j: (i, 0, j)),          # x tiles
            pl.BlockSpec((C, ncp), lambda i, j: (0, 0), **const_kw),     # weight^T
            pl.BlockSpec((1, ncp), lambda i, j: (0, 0), **const_kw),     # bias
        ]
        return pl.pallas_call(
            kernel,
            out_shape=jax.ShapeDtypeStruct((N, 1, ncp), out_dtype),
            grid_spec=pltpu.PrefetchScalarGridSpec(
                num_scalar_prefetch=0,
                grid=grid,
                in_specs=in_specs,
                out_specs=pl.BlockSpec((tn, 1, ncp), lambda i, j: (i, 0, 0)),
                scratch_shapes=scratch,
            ),
            compiler_params=pltpu.CompilerParams(
                dimension_semantics=("parallel", "arbitrary"),
                vmem_limit_bytes=vmem_limit,
            ),
        )

    try:
        out_padded = build(True)(x, w_t, b_pad)
    except Exception:
        # This JAX build rejected pipeline_mode=pl.Buffered(1); fall back to the
        # default (double-buffered) constant operands.
        out_padded = build(False)(x, w_t, b_pad)

    return out_padded.reshape(N, ncp)[:, :num_classes]


# --------------------------------------------------------------------------- #
# Self-test
# --------------------------------------------------------------------------- #
if __name__ == "__main__":
    key = jax.random.PRNGKey(0)
    k_x, k_w, k_b, k_x2, k_x3 = jax.random.split(key, 5)

    num_classes = 10

    # --- Case 1: module-default small shapes (f32, single spatial step) ----------
    N, C, H, W = 2, 4, 16, 16
    x = jax.random.normal(k_x, (N, C, H, W), dtype=jnp.float32)
    bound = 1.0 / jnp.sqrt(jnp.float32(C))
    weight = jax.random.uniform(k_w, (num_classes, C), jnp.float32, -bound, bound)
    bias = jax.random.uniform(k_b, (num_classes,), jnp.float32, -bound, bound)

    out = jax.block_until_ready(classifier_head(x, weight, bias))
    ref = jnp.mean(x, axis=(2, 3)) @ weight.T + bias
    assert out.shape == (N, num_classes)
    assert jnp.allclose(out, ref, atol=1e-5, rtol=1e-5)

    # --- Case 2: bf16 activations + forced spatial tiling (accumulator path) -----
    N2, C2, H2, W2 = 4, 16, 16, 16
    x2 = jax.random.normal(k_x2, (N2, C2, H2, W2), dtype=jnp.bfloat16)
    weight2 = jax.random.uniform(k_w, (num_classes, C2), jnp.float32, -0.25, 0.25)
    bias2 = jax.random.uniform(k_b, (num_classes,), jnp.float32, -0.25, 0.25)
    out2 = jax.block_until_ready(
        classifier_head(x2, weight2, bias2, x_block_bytes=4096))
    ref2 = jnp.mean(x2.astype(jnp.float32), axis=(2, 3)) @ weight2.T + bias2
    assert out2.shape == (N2, num_classes)
    assert jnp.allclose(out2, ref2, atol=1e-4, rtol=1e-4)

    # --- Case 3: 7x7 spatial extent (lane dim not a multiple of 128) -------------
    N3, C3 = 2, 8
    x3 = jax.random.normal(k_x3, (N3, C3, 7, 7), dtype=jnp.float32)
    weight3 = jax.random.uniform(k_w, (num_classes, C3), jnp.float32, -0.25, 0.25)
    bias3 = jax.random.uniform(k_b, (num_classes,), jnp.float32, -0.25, 0.25)
    out3 = jax.block_until_ready(classifier_head(x3, weight3, bias3))
    ref3 = jnp.mean(x3, axis=(2, 3)) @ weight3.T + bias3
    assert out3.shape == (N3, num_classes)
    assert jnp.allclose(out3, ref3, atol=1e-5, rtol=1e-5)

    print("KERNEL_OK")
</pallas_src>

<mosaic_0001>
module attributes {stable_mosaic.version = 11 : i64} {
  func.func @_pool_linear_single_step_kernel(%arg0: i32, %arg1: i32, %arg2: memref<1x4x256xf32, #tpu.memory_space<vmem>>, %arg3: memref<4x128xf32, #tpu.memory_space<vmem>>, %arg4: memref<1x128xf32, #tpu.memory_space<vmem>>, %arg5: memref<1x1x128xf32, #tpu.memory_space<vmem>>) attributes {dimension_semantics = [#tpu.dimension_semantics<parallel>, #tpu.dimension_semantics<arbitrary>], iteration_bounds = array<i64: 2, 1>, scalar_prefetch = 0 : i64, scratch_operands = 0 : i64, tpu.core_type = #tpu.core_type<tc>, window_params = [{transform_indices = @transform_0, window_bounds = array<i64: 1, 4, 256>}, {pipeline_mode = #tpu.pipeline_mode<synchronous>, transform_indices = @transform_1, window_bounds = array<i64: 4, 128>}, {pipeline_mode = #tpu.pipeline_mode<synchronous>, transform_indices = @transform_2, window_bounds = array<i64: 1, 128>}, {transform_indices = @transform_3, window_bounds = array<i64: 1, 1, 128>}]} {
    %c0 = arith.constant 0 : index
    %c0_0 = arith.constant 0 : index
    %c0_1 = arith.constant 0 : index
    %0 = vector.load %arg2[%c0, %c0_0, %c0_1] : memref<1x4x256xf32, #tpu.memory_space<vmem>>, vector<1x4x256xf32>
    %cst = arith.constant dense<0.000000e+00> : vector<1x4xf32>
    %1 = vector.multi_reduction <add>, %0, %cst [2] : vector<1x4x256xf32> to vector<1x4xf32>
    %cst_2 = arith.constant 3.906250e-03 : f32
    %2 = vector.broadcast %cst_2 : f32 to vector<1x4xf32>
    %3 = arith.mulf %1, %2 : vector<1x4xf32>
    %c0_3 = arith.constant 0 : index
    %c0_4 = arith.constant 0 : index
    %4 = vector.load %arg3[%c0_3, %c0_4] : memref<4x128xf32, #tpu.memory_space<vmem>>, vector<4x128xf32>
    %cst_5 = arith.constant dense<0.000000e+00> : vector<1x128xf32>
    %5 = tpu.matmul %3, %4, %cst_5 {dimension_numbers = #tpu.dot_dimension_numbers<[1], [0], [0], [1], [0, 0, 1, 1], [], []>} : vector<1x4xf32>, vector<4x128xf32>, vector<1x128xf32> -> vector<1x128xf32>
    %c0_6 = arith.constant 0 : index
    %c0_7 = arith.constant 0 : index
    %6 = vector.load %arg4[%c0_6, %c0_7] : memref<1x128xf32, #tpu.memory_space<vmem>>, vector<1x128xf32>
    %7 = arith.addf %5, %6 : vector<1x128xf32>
    %8 = vector.shape_cast %7 : vector<1x128xf32> to vector<1x1x128xf32>
    %c0_8 = arith.constant 0 : index
    %c0_9 = arith.constant 0 : index
    %c0_10 = arith.constant 0 : index
    %9 = vector.load %arg5[%c0_8, %c0_9, %c0_10] : memref<1x1x128xf32, #tpu.memory_space<vmem>>, vector<1x1x128xf32>
    tpu.vector_store %arg5[%c0_8, %c0_9, %c0_10], %8 {strides = array<i32>} : memref<1x1x128xf32, #tpu.memory_space<vmem>>, vector<1x1x128xf32>,
    return
  }
  func.func @transform_0(%arg0: i32, %arg1: i32) -> (i32, i32, i32) {
    %c0_i32 = arith.constant 0 : i32
    %c0_i32_0 = arith.constant 0 : i32
    return %arg0, %c0_i32, %arg1 : i32, i32, i32
  }
  func.func @transform_1(%arg0: i32, %arg1: i32) -> (i32, i32) {
    %c0_i32 = arith.constant 0 : i32
    %c0_i32_0 = arith.constant 0 : i32
    %c0_i32_1 = arith.constant 0 : i32
    return %c0_i32, %c0_i32_0 : i32, i32
  }
  func.func @transform_2(%arg0: i32, %arg1: i32) -> (i32, i32) {
    %c0_i32 = arith.constant 0 : i32
    %c0_i32_0 = arith.constant 0 : i32
    %c0_i32_1 = arith.constant 0 : i32
    return %c0_i32, %c0_i32_0 : i32, i32
  }
  func.func @transform_3(%arg0: i32, %arg1: i32) -> (i32, i32, i32) {
    %c0_i32 = arith.constant 0 : i32
    %c0_i32_0 = arith.constant 0 : i32
    %c0_i32_1 = arith.constant 0 : i32
    return %arg0, %c0_i32, %c0_i32_0 : i32, i32, i32
  }
}

module attributes {stable_mosaic.version = 11 : i64} {
  func.func @_pool_linear_single_step_kernel(%arg0: i32, %arg1: i32, %arg2: memref<1x4x256xf32, #tpu.memory_space<vmem>>, %arg3: memref<4x128xf32, #tpu.memory_space<vmem>>, %arg4: memref<1x128xf32, #tpu.memory_space<vmem>>, %arg5: memref<1x1x128xf32, #tpu.memory_space<vmem>>) attributes {dimension_semantics = [#tpu.dimension_semantics<parallel>, #tpu.dimension_semantics<arbitrary>], iteration_bounds = array<i64: 2, 1>, scalar_prefetch = 0 : i64, scratch_operands = 0 : i64, tpu.core_type = #tpu.core_type<tc>, window_params = [{transform_indices = @transform_0, window_bounds = array<i64: 1, 4, 256>}, {pipeline_mode = #tpu.pipeline_mode<synchronous>, transform_indices = @transform_1, window_bounds = array<i64: 4, 128>}, {pipeline_mode = #tpu.pipeline_mode<synchronous>, transform_indices = @transform_2, window_bounds = array<i64: 1, 128>}, {transform_indices = @transform_3, window_bounds = array<i64: 1, 1, 128>}]} {
    %c0 = arith.constant 0 : index
    %c0_0 = arith.constant 0 : index
    %c0_1 = arith.constant 0 : index
    %0 = vector.load %arg2[%c0, %c0_0, %c0_1] : memref<1x4x256xf32, #tpu.memory_space<vmem>>, vector<1x4x256xf32>
    %cst = arith.constant dense<0.000000e+00> : vector<1x4xf32>
    %1 = vector.multi_reduction <add>, %0, %cst [2] : vector<1x4x256xf32> to vector<1x4xf32>
    %cst_2 = arith.constant 3.906250e-03 : f32
    %2 = vector.broadcast %cst_2 : f32 to vector<1x4xf32>
    %3 = arith.mulf %1, %2 : vector<1x4xf32>
    %c0_3 = arith.constant 0 : index
    %c0_4 = arith.constant 0 : index
    %4 = vector.load %arg3[%c0_3, %c0_4] : memref<4x128xf32, #tpu.memory_space<vmem>>, vector<4x128xf32>
    %cst_5 = arith.constant dense<0.000000e+00> : vector<1x128xf32>
    %5 = tpu.matmul %3, %4, %cst_5 {dimension_numbers = #tpu.dot_dimension_numbers<[1], [0], [0], [1], [0, 0, 1, 1], [], []>} : vector<1x4xf32>, vector<4x128xf32>, vector<1x128xf32> -> vector<1x128xf32>
    %c0_6 = arith.constant 0 : index
    %c0_7 = arith.constant 0 : index
    %6 = vector.load %arg4[%c0_6, %c0_7] : memref<1x128xf32, #tpu.memory_space<vmem>>, vector<1x128xf32>
    %7 = arith.addf %5, %6 : vector<1x128xf32>
    %8 = vector.shape_cast %7 : vector<1x128xf32> to vector<1x1x128xf32>
    %c0_8 = arith.constant 0 : index
    %c0_9 = arith.constant 0 : index
    %c0_10 = arith.constant 0 : index
    %9 = vector.load %arg5[%c0_8, %c0_9, %c0_10] : memref<1x1x128xf32, #tpu.memory_space<vmem>>, vector<1x1x128xf32>
    tpu.vector_store %arg5[%c0_8, %c0_9, %c0_10], %8 {strides = array<i32>} : memref<1x1x128xf32, #tpu.memory_space<vmem>>, vector<1x1x128xf32>,
    return
  }
  func.func @transform_0(%arg0: i32, %arg1: i32) -> (i32, i32, i32) {
    %c0_i32 = arith.constant 0 : i32
    %c0_i32_0 = arith.constant 0 : i32
    return %arg0, %c0_i32, %arg1 : i32, i32, i32
  }
  func.func @transform_1(%arg0: i32, %arg1: i32) -> (i32, i32) {
    %c0_i32 = arith.constant 0 : i32
    %c0_i32_0 = arith.constant 0 : i32
    %c0_i32_1 = arith.constant 0 : i32
    return %c0_i32, %c0_i32_0 : i32, i32
  }
  func.func @transform_2(%arg0: i32, %arg1: i32) -> (i32, i32) {
    %c0_i32 = arith.constant 0 : i32
    %c0_i32_0 = arith.constant 0 : i32
    %c0_i32_1 = arith.constant 0 : i32
    return %c0_i32, %c0_i32_0 : i32, i32
  }
  func.func @transform_3(%arg0: i32, %arg1: i32) -> (i32, i32, i32) {
    %c0_i32 = arith.constant 0 : i32
    %c0_i32_0 = arith.constant 0 : i32
    %c0_i32_1 = arith.constant 0 : i32
    return %arg0, %c0_i32, %c0_i32_0 : i32, i32, i32
  }
}

</mosaic_0001>

<llo_original>
// kernel: tpu_custom_call.1
$region0: #{tpu_custom_call.1}
  #allocation0 [shape = 'u32[]', space=smem, size = 0x4, offset = 0x4, fixed_abs, tag = 'smem constant byte address 0x4 - core index']
  #allocation1 [shape = 'u32[144,128]{1,0:T(1,128)}', space=vmem, size = 0x12000, scoped, tag = 'internal scratch']
  %s0 = inlined_call_operand.hbm [shape: f32[2,4,256], index: 0, kind: input, shape index: {}]
  %s1 = inlined_call_operand.hbm [shape: f32[4,128], index: 1, kind: input, shape index: {}]
  %s2 = inlined_call_operand.vmem [shape: f32[1,128], index: 2, kind: input, shape index: {}]
  %s3 = inlined_call_operand.hbm [shape: f32[2,1,128], index: 3, kind: output, shape index: {}]
  %s4 = sld [smem:[#allocation0]]
  $region53: #{tpu_custom_call.1} parent=0
    _
  %s6 = ssub.s32 1, %s4
  %s7 = scalar_select 0, %s6, %s4
  $region1: #{tpu_custom_call.1} parent=0
    #allocation2 [shape = 'u8[8192]{0}', space=vmem, size = 0x2000, scoped, tag = 'input window, operand 0']
    #allocation3 [shape = 's32[2]{0}', space=sflag, size = 0x8, scoped, tag = 'scoped memory for tpu_custom_call.1']
    #allocation4 [shape = 's32[2]{0}', space=sflag, size = 0x8, scoped, tag = 'scoped memory for tpu_custom_call.1']
    #allocation5 [shape = 'u8[2048]{0}', space=vmem, size = 0x800, scoped, tag = 'input window, operand 1, single buffered']
    #allocation6 [shape = 's32[1]{0}', space=sflag, size = 0x4, scoped, tag = 'scoped memory for tpu_custom_call.1']
    #allocation7 [shape = 'u8[1024]{0}', space=vmem, size = 0x400, scoped, tag = 'output window, operand 0']
    %8 = vsyncpa [#allocation3], 0
    %s9 = scalar_lea.sflag [#allocation3], 1
    %10 = vsyncpa %s9, 0
    %11 = vsyncpa [#allocation6], 0
    %12 = vsyncpa [#allocation4], 0
    %s13 = scalar_lea.sflag [#allocation4], 1
    %14 = vsyncpa %s13, 0
    loop: start=0, step=1, limit=4
    $region2: #{tpu_custom_call.1} parent=1 // loop_pre_header
      _
    $region3: #{tpu_custom_call.1} parent=1 // loop_header
      %s16 = sphi 0, %s20
      %p17 = scmp.ge.s32.totalorder %s16, 4
      %s23 = sphi 0, %s35
      %s24 = sphi 0, %s31
      %s25 = sphi 0, %s23
      %s26 = sphi 0, %s24
      %s27 = sphi 0, %s25
      %s28 = sphi 0, %s26
      %s40 = sphi 0, %s42
      %s43 = sphi 0, %s40
      %s44 = sphi 0, %s43
      %s60 = sphi 0, %s44
      %s64 = sphi 0, %s64
      %s66 = sphi 0, %s64
      %s67 = sphi 0, %s66
      %s81 = sphi 0, %s67
      %s85 = sphi 0, %s85
      %s87 = sphi 0, %s85
      %s88 = sphi 0, %s87
      %s102 = sphi 0, %s88
      %s108 = sphi 0, %s110
      %s111 = sphi 0, %s108
      %s112 = sphi 0, %s111
      %s128 = sphi 0, %s112
    $region4: #{tpu_custom_call.1} parent=1 // loop_header_branch
      %19 = sbr.rel (%p17) target = $region8
    $region5: #{tpu_custom_call.1} parent=1 // loop_body
      %s21 = ssub.s32 %s16, 1
      %s22 = ssub.s32 %s16, 2
      %s29 = sadd.s32 1, %s24
      %p30 = scmp.ge.s32.totalorder %s29, 1
      %s31 = scalar_select %p30, 0, %s29
      %s32 = sadd.s32 1, %s23
      %s33 = scalar_select %p30, %s32, %s23
      %p34 = scmp.ge.s32.totalorder %s33, 2
      %s35 = scalar_select %p34, 0, %s33
      %s36 = ssub.s32 %s23, %s35
      %s37 = ssub.s32 %s24, %s31
      %s38 = sor.u32 %s36, %s37
      %p39 = scmp.eq.s32.totalorder %s38, 0
      %s41 = sadd.s32 %s40, 1
      %s42 = scalar_select %p39, %s40, %s41
      %p45 = pneg %p39
      %p46 = scmp.eq.s32.totalorder %s16, 1
      %p47 = por %p45, %p46
      %p48 = scmp.ne.s32.totalorder %s40, %s43
      %p49 = scmp.eq.s32.totalorder %s16, 0
      %p50 = por %p48, %p49
      %p51 = scmp.ne.s32.totalorder %s40, %s43
      %p52 = scmp.eq.s32.totalorder %s21, 1
      %p53 = por %p51, %p52
      %p54 = scmp.ne.s32.totalorder %s43, %s44
      %p55 = scmp.eq.s32.totalorder %s21, 0
      %p56 = por %p54, %p55
      %p57 = scmp.ne.s32.totalorder %s43, %s44
      %p58 = scmp.eq.s32.totalorder %s22, 1
      %p59 = por %p57, %p58
      %p61 = scmp.ne.s32.totalorder %s44, %s60
      %p62 = scmp.eq.s32.totalorder %s22, 0
      %p63 = por %p61, %p62
      %s65 = sadd.s32 %s64, 1
      %p68 = scmp.eq.s32.totalorder %s16, 1
      %p69 = scmp.ne.s32.totalorder %s64, %s66
      %p70 = scmp.eq.s32.totalorder %s16, 0
      %p71 = por %p69, %p70
      %p72 = scmp.ne.s32.totalorder %s64, %s66
      %p73 = scmp.eq.s32.totalorder %s21, 1
      %p74 = por %p72, %p73
      %p75 = scmp.ne.s32.totalorder %s66, %s67
      %p76 = scmp.eq.s32.totalorder %s21, 0
      %p77 = por %p75, %p76
      %p78 = scmp.ne.s32.totalorder %s66, %s67
      %p79 = scmp.eq.s32.totalorder %s22, 1
      %p80 = por %p78, %p79
      %p82 = scmp.ne.s32.totalorder %s67, %s81
      %p83 = scmp.eq.s32.totalorder %s22, 0
      %p84 = por %p82, %p83
      %s86 = sadd.s32 %s85, 1
      %p89 = scmp.eq.s32.totalorder %s16, 1
      %p90 = scmp.ne.s32.totalorder %s85, %s87
      %p91 = scmp.eq.s32.totalorder %s16, 0
      %p92 = por %p90, %p91
      %p93 = scmp.ne.s32.totalorder %s85, %s87
      %p94 = scmp.eq.s32.totalorder %s21, 1
      %p95 = por %p93, %p94
      %p96 = scmp.ne.s32.totalorder %s87, %s88
      %p97 = scmp.eq.s32.totalorder %s21, 0
      %p98 = por %p96, %p97
      %p99 = scmp.ne.s32.totalorder %s87, %s88
      %p100 = scmp.eq.s32.totalorder %s22, 1
      %p101 = por %p99, %p100
      %p103 = scmp.ne.s32.totalorder %s88, %s102
      %p104 = scmp.eq.s32.totalorder %s22, 0
      %p105 = por %p103, %p104
      %s106 = ssub.s32 %s23, %s35
      %p107 = scmp.eq.s32.totalorder %s106, 0
      %s109 = sadd.s32 %s108, 1
      %s110 = scalar_select %p107, %s108, %s109
      %p113 = pneg %p107
      %p114 = scmp.eq.s32.totalorder %s16, 1
      %p115 = por %p113, %p114
      %p116 = scmp.ne.s32.totalorder %s108, %s111
      %p117 = scmp.eq.s32.totalorder %s16, 0
      %p118 = por %p116, %p117
      %p119 = scmp.ne.s32.totalorder %s108, %s111
      %p120 = scmp.eq.s32.totalorder %s21, 1
      %p121 = por %p119, %p120
      %p122 = scmp.ne.s32.totalorder %s111, %s112
      %p123 = scmp.eq.s32.totalorder %s21, 0
      %p124 = por %p122, %p123
      %p125 = scmp.ne.s32.totalorder %s111, %s112
      %p126 = scmp.eq.s32.totalorder %s22, 1
      %p127 = por %p125, %p126
      %p129 = scmp.ne.s32.totalorder %s112, %s128
      %p130 = scmp.eq.s32.totalorder %s22, 0
      %p131 = por %p129, %p130
      %p132 = scmp.le.s32.totalorder 1, %s16
      %p133 = scmp.lt.s32.totalorder %s16, 3
      %p134 = pnand %p132, %p133
      %p135 = pneg %p134
      // Predicated region
      $region9: #{tpu_custom_call.1} parent=5 // pred_check
        _
      $region10: #{tpu_custom_call.1} parent=5 // pred_check_branch
        %137 = sbr.rel (%p134) target = $region12
      $region11: #{tpu_custom_call.1} parent=5 // pred_region
        %s138 = ssub.s32 %s16, 1
        // Predicated region
        $region13: #{tpu_custom_call.1} parent=11 // pred_check
          %p139 = pneg %p77
        $region14: #{tpu_custom_call.1} parent=11 // pred_check_branch
          %141 = sbr.rel (%p139) target = $region16
        $region15: #{tpu_custom_call.1} parent=11 // pred_region
          %s143 = ssub.s32 64, 64
          %144 = vsyncadd [#allocation6], %s143
          %s146 = sshll.u32 [#allocation5], 4
          %s147 = int_to_ptr.vmem [resolvable:$true] %s146
          %149 = dma.hbm_to_vmem [thread:$0]  %s1, 64, %s147, [#allocation6]
        $region16: #{tpu_custom_call.1} parent=11 // pred_fallthru
          _
        // Predicated region
        $region17: #{tpu_custom_call.1} parent=11 // pred_check
          %p150 = pneg %p98
        $region18: #{tpu_custom_call.1} parent=11 // pred_check_branch
          %152 = sbr.rel (%p150) target = $region20
        $region19: #{tpu_custom_call.1} parent=11 // pred_region
          _
        $region20: #{tpu_custom_call.1} parent=11 // pred_fallthru
          _
      $region12: #{tpu_custom_call.1} parent=5 // pred_fallthru
        _
      %p153 = scmp.lt.s32.totalorder %s16, 2
      // Predicated region
      $region21: #{tpu_custom_call.1} parent=5 // pred_check
        %p154 = pneg %p153
      $region22: #{tpu_custom_call.1} parent=5 // pred_check_branch
        %156 = sbr.rel (%p154) target = $region24
      $region23: #{tpu_custom_call.1} parent=5 // pred_region
        // Predicated region
        $region25: #{tpu_custom_call.1} parent=23 // pred_check
          %p157 = pneg %p50
        $region26: #{tpu_custom_call.1} parent=23 // pred_check_branch
          %159 = sbr.rel (%p157) target = $region28
        $region27: #{tpu_custom_call.1} parent=23 // pred_region
          %s160 = sand.u32 %s40, 1
          %s161 = scalar_lea.sflag [#allocation3], %s160
          %s162 = sand.u32 %s40, 1
          %s163 = smul.addr %s162, 8
          %s164 = scalar_lea.vmem [#allocation2], %s163
          %s165 = smul.u32 2, %s24
          %s167 = ssub.s32 128, 128
          %168 = vsyncadd %s161, %s167
          %s169 = smul.addr %s23, 2
          %s170 = sadd.s32 %s165, %s169
          %s171 = smul.addr %s170, 64
          %s172 = scalar_lea.hbm %s0, %s171
          %s174 = sshll.u32 %s164, 4
          %s175 = int_to_ptr.vmem [resolvable:$true] %s174
          %177 = dma.hbm_to_vmem [thread:$0]  %s172, 128, %s175, %s161
        $region28: #{tpu_custom_call.1} parent=23 // pred_fallthru
          _
      $region24: #{tpu_custom_call.1} parent=5 // pred_fallthru
        _
      %p178 = scmp.le.s32.totalorder 1, %s16
      %p179 = scmp.lt.s32.totalorder %s16, 3
      %p180 = pnand %p178, %p179
      %p181 = pneg %p180
      // Predicated region
      $region29: #{tpu_custom_call.1} parent=5 // pred_check
        _
      $region30: #{tpu_custom_call.1} parent=5 // pred_check_branch
        %183 = sbr.rel (%p180) target = $region32
      $region31: #{tpu_custom_call.1} parent=5 // pred_region
        %s184 = ssub.s32 %s16, 1
        %s185 = sand.u32 %s43, 1
        %s186 = scalar_lea.sflag [#allocation3], %s185
        %s187 = sand.u32 %s43, 1
        %s188 = smul.addr %s187, 8
        %s189 = scalar_lea.vmem [#allocation2], %s188
        // Predicated region
        $region33: #{tpu_custom_call.1} parent=31 // pred_check
          %p190 = pneg %p56
        $region34: #{tpu_custom_call.1} parent=31 // pred_check_branch
          %192 = sbr.rel (%p190) target = $region36
        $region35: #{tpu_custom_call.1} parent=31 // pred_region
          %193 = dma.done %s186, 128
        $region36: #{tpu_custom_call.1} parent=31 // pred_fallthru
          _
        // Predicated region
        $region37: #{tpu_custom_call.1} parent=31 // pred_check
          %p194 = pneg %p77
        $region38: #{tpu_custom_call.1} parent=31 // pred_check_branch
          %196 = sbr.rel (%p194) target = $region40
        $region39: #{tpu_custom_call.1} parent=31 // pred_region
          %197 = dma.done [#allocation6], 64
        $region40: #{tpu_custom_call.1} parent=31 // pred_fallthru
          _
        %s198 = sand.u32 %s43, 1
        %s199 = scalar_lea.sflag [#allocation3], %s198
        %s200 = sand.u32 %s43, 1
        %s201 = smul.addr %s200, 8
        %s202 = scalar_lea.vmem [#allocation2], %s201
        %p203 = pneg %p56
        %p204 = pneg %p53
        %p205 = pneg %p77
        %p206 = pneg %p74
        %p207 = pneg %p98
        %p208 = pneg %p95
        %p209 = pneg %p124
        %p210 = pneg %p121
        %s211 = sand.u32 %s111, 1
        %s212 = scalar_lea.sflag [#allocation4], %s211
        %s213 = sand.u32 %s111, 1
        %s214 = scalar_lea.vmem [#allocation7], %s213
        %s215 = smul.u32 2, %s26
        %v216 = vld [vmem:[%s189] sm:$0xff]
        %v218 = vcombine.high %v216, %v216
        %vm220 = vcmask 1043456
        %v221 = vsel %vm220, %v216, 0.0
        %v222 = vsel %vm220, %v218, 0.0
        %v223 = vadd.f32 %v221, %v222
        %224 = vadd.xlane.f32.xlu0 %v223
        %v225 = vpop.xlane.xlu0 %224
        %v226 = vmul.f32 %v225, 0.00390625
        %v227 = vld [vmem:[#allocation5] sm:$0xf]
        %v228 = vld [vmem:[%s2] sm:$0x1]
        %v230 = vlaneseq
        %v231 = vand.u32 %v230, 127
        %v232 = vlaneseq
        %v233 = vshrl.u32 %v232, 7
        %v234 = vsub.s32 %v231, %v233
        %v235 = vrot.slane %v226, %v234
        %vm236 = vcmask 31744
        %v237 = vsel %vm236, %v235, 0
        %v240 = vsel %vm220, %v227, 0
        %242 = vmatprep.subr.mxu0 0.0
        %243 = vmatpush1.msra.mxu0 %v240
        %244 = vmatprep.subr.mxu0 0.0
        %245 = vmatpush1.msra.mxu0 0.0
        %246 = vmatprep.subr.mxu0 0.0
        %247 = vmatpush1.msra.mxu0 0.0
        %248 = vmatprep.subr.mxu0 0.0
        %249 = vmatpush1.msra.mxu0 0.0
        %250 = vmatprep.subr.mxu0 0.0
        %251 = vmatpush1.msra.mxu0 0.0
        %252 = vmatprep.subr.mxu0 0.0
        %253 = vmatpush1.msra.mxu0 0.0
        %254 = vmatprep.subr.mxu0 0.0
        %255 = vmatpush1.msra.mxu0 0.0
        %256 = vmatprep.subr.mxu0 0.0
        %257 = vmatpush1.msra.mxu0 0.0
        %258 = vmatprep.subr.mxu0 0.0
        %259 = vmatpush1.msra.mxu0 0.0
        %260 = vmatprep.subr.mxu0 0.0
        %261 = vmatpush1.msra.mxu0 0.0
        %262 = vmatprep.subr.mxu0 0.0
        %263 = vmatpush1.msra.mxu0 0.0
        %264 = vmatprep.subr.mxu0 0.0
        %265 = vmatpush1.msra.mxu0 0.0
        %266 = vmatprep.subr.mxu0 0.0
        %267 = vmatpush1.msra.mxu0 0.0
        %268 = vmatprep.subr.mxu0 0.0
        %269 = vmatpush1.msra.mxu0 0.0
        %270 = vmatprep.subr.mxu0 0.0
        %271 = vmatpush1.msra.mxu0 0.0
        %272 = vmatprep.subr.mxu0 0.0
        %273 = vmatpush1.msra.mxu0 0.0
        %274 = vmatprep.subr.mxu0 0.0
        %275 = vmatpush1.msra.mxu0 0.0
        %276 = vmatprep.subr.mxu0 0.0
        %277 = vmatpush1.msra.mxu0 0.0
        %278 = vmatprep.subr.mxu0 0.0
        %279 = vmatpush1.msra.mxu0 0.0
        %280 = vmatprep.subr.mxu0 0.0
        %281 = vmatpush1.msra.mxu0 0.0
        %282 = vmatprep.subr.mxu0 0.0
        %283 = vmatpush1.msra.mxu0 0.0
        %284 = vmatprep.subr.mxu0 0.0
        %285 = vmatpush1.msra.mxu0 0.0
        %286 = vmatprep.subr.mxu0 0.0
        %287 = vmatpush1.msra.mxu0 0.0
        %288 = vmatprep.subr.mxu0 0.0
        %289 = vmatpush1.msra.mxu0 0.0
        %290 = vmatprep.subr.mxu0 0.0
        %291 = vmatpush1.msra.mxu0 0.0
        %292 = vmatprep.subr.mxu0 0.0
        %293 = vmatpush1.msra.mxu0 0.0
        %294 = vmatprep.subr.mxu0 0.0
        %295 = vmatpush1.msra.mxu0 0.0
        %296 = vmatprep.subr.mxu0 0.0
        %297 = vmatpush1.msra.mxu0 0.0
        %298 = vmatprep.subr.mxu0 0.0
        %299 = vmatpush1.msra.mxu0 0.0
        %300 = vmatprep.subr.mxu0 0.0
        %301 = vmatpush1.msra.mxu0 0.0
        %302 = vmatprep.subr.mxu0 0.0
        %303 = vmatpush1.msra.mxu0 0.0
        %304 = vmatprep.subr.mxu0 0.0
        %305 = vmatpush1.msra.mxu0 0.0
        %306 = vmatprep.mubr.f32.mxu0 0.0
        %307 = vmatmul.mubr.f32.gmra.mrb[0].mxu0 %v237
        %v308 = vpop.f32.mrb[0].mxu0
        %v309 = vadd.f32 %v228, %v308
        %v310 = vpop.f32.mrb[0].mxu0
        %311 = vdwg.mxu0
        %312 = vst [vmem:[%s214] sm:$0x1] %v309
        %s313 = sand.u32 %s111, 1
        %s314 = scalar_lea.sflag [#allocation4], %s313
        %s315 = sand.u32 %s111, 1
        %s316 = scalar_lea.vmem [#allocation7], %s315
        // Predicated region
        $region41: #{tpu_custom_call.1} parent=31 // pred_check
          %p317 = pneg %p121
        $region42: #{tpu_custom_call.1} parent=31 // pred_check_branch
          %319 = sbr.rel (%p317) target = $region44
        $region43: #{tpu_custom_call.1} parent=31 // pred_region
          %s321 = ssub.s32 16, 16
          %322 = vsyncadd %s314, %s321
          %s323 = smul.addr %s25, 16
          %s324 = scalar_lea.hbm %s3, %s323
          %s326 = sshll.u32 %s316, 4
          %s327 = int_to_ptr.vmem [resolvable:$true] %s326
          %329 = dma.vmem_to_hbm [thread:$0]  %s327, 16, %s324, %s314
        $region44: #{tpu_custom_call.1} parent=31 // pred_fallthru
          _
      $region32: #{tpu_custom_call.1} parent=5 // pred_fallthru
        _
      %p330 = scmp.le.s32.totalorder 2, %s16
      // Predicated region
      $region45: #{tpu_custom_call.1} parent=5 // pred_check
        %p331 = pneg %p330
      $region46: #{tpu_custom_call.1} parent=5 // pred_check_branch
        %333 = sbr.rel (%p331) target = $region48
      $region47: #{tpu_custom_call.1} parent=5 // pred_region
        %s334 = ssub.s32 %s16, 2
        // Predicated region
        $region49: #{tpu_custom_call.1} parent=47 // pred_check
          %p335 = pneg %p127
        $region50: #{tpu_custom_call.1} parent=47 // pred_check_branch
          %337 = sbr.rel (%p335) target = $region52
        $region51: #{tpu_custom_call.1} parent=47 // pred_region
          %s338 = sand.u32 %s112, 1
          %s339 = scalar_lea.sflag [#allocation4], %s338
          %s340 = sand.u32 %s112, 1
          %s341 = scalar_lea.vmem [#allocation7], %s340
          %342 = dma.done %s339, 16
        $region52: #{tpu_custom_call.1} parent=47 // pred_fallthru
          _
      $region48: #{tpu_custom_call.1} parent=5 // pred_fallthru
        _
    $region6: #{tpu_custom_call.1} parent=1 // loop_footer
      %s20 = sadd.s32 1, %s16
    $region7: #{tpu_custom_call.1} parent=1 // loop_footer_branch
      %15 = sbr.rel target = $region3
    $region8: #{tpu_custom_call.1} parent=1 // loop_exit
      _
    %343 = vsyncpa [#allocation3], 1
    %s344 = scalar_lea.sflag [#allocation3], 1
    %345 = vsyncpa %s344, 1
    %346 = vsyncpa [#allocation6], 1
    %347 = vsyncpa [#allocation4], 1
    %s348 = scalar_lea.sflag [#allocation4], 1
    %349 = vsyncpa %s348, 1

// kernel: tpu_custom_call.1
$region0: #{tpu_custom_call.1}
  #allocation0 [shape = 'u32[]', space=smem, size = 0x4, offset = 0x4, fixed_abs, tag = 'smem constant byte address 0x4 - core index']
  #allocation1 [shape = 'u32[144,128]{1,0:T(1,128)}', space=vmem, size = 0x12000, scoped, tag = 'internal scratch']
  %s0 = inlined_call_operand.hbm [shape: f32[2,4,256], index: 0, kind: input, shape index: {}]
  %s1 = inlined_call_operand.hbm [shape: f32[4,128], index: 1, kind: input, shape index: {}]
  %s2 = inlined_call_operand.vmem [shape: f32[1,128], index: 2, kind: input, shape index: {}]
  %s3 = inlined_call_operand.hbm [shape: f32[2,1,128], index: 3, kind: output, shape index: {}]
  %s4 = sld [smem:[#allocation0]]
  $region53: #{tpu_custom_call.1} parent=0
    _
  %s6 = ssub.s32 1, %s4
  %s7 = scalar_select 0, %s6, %s4
  $region1: #{tpu_custom_call.1} parent=0
    #allocation2 [shape = 'u8[8192]{0}', space=vmem, size = 0x2000, scoped, tag = 'input window, operand 0']
    #allocation3 [shape = 's32[2]{0}', space=sflag, size = 0x8, scoped, tag = 'scoped memory for tpu_custom_call.1']
    #allocation4 [shape = 's32[2]{0}', space=sflag, size = 0x8, scoped, tag = 'scoped memory for tpu_custom_call.1']
    #allocation5 [shape = 'u8[2048]{0}', space=vmem, size = 0x800, scoped, tag = 'input window, operand 1, single buffered']
    #allocation6 [shape = 's32[1]{0}', space=sflag, size = 0x4, scoped, tag = 'scoped memory for tpu_custom_call.1']
    #allocation7 [shape = 'u8[1024]{0}', space=vmem, size = 0x400, scoped, tag = 'output window, operand 0']
    %8 = vsyncpa [#allocation3], 0
    %s9 = scalar_lea.sflag [#allocation3], 1
    %10 = vsyncpa %s9, 0
    %11 = vsyncpa [#allocation6], 0
    %12 = vsyncpa [#allocation4], 0
    %s13 = scalar_lea.sflag [#allocation4], 1
    %14 = vsyncpa %s13, 0
    loop: start=0, step=1, limit=4
    $region2: #{tpu_custom_call.1} parent=1 // loop_pre_header
      _
    $region3: #{tpu_custom_call.1} parent=1 // loop_header
      %s16 = sphi 0, %s20
      %p17 = scmp.ge.s32.totalorder %s16, 4
      %s23 = sphi 0, %s35
      %s24 = sphi 0, %s31
      %s25 = sphi 0, %s23
      %s26 = sphi 0, %s24
      %s27 = sphi 0, %s25
      %s28 = sphi 0, %s26
      %s40 = sphi 0, %s42
      %s43 = sphi 0, %s40
      %s44 = sphi 0, %s43
      %s60 = sphi 0, %s44
      %s64 = sphi 0, %s64
      %s66 = sphi 0, %s64
      %s67 = sphi 0, %s66
      %s81 = sphi 0, %s67
      %s85 = sphi 0, %s85
      %s87 = sphi 0, %s85
      %s88 = sphi 0, %s87
      %s102 = sphi 0, %s88
      %s108 = sphi 0, %s110
      %s111 = sphi 0, %s108
      %s112 = sphi 0, %s111
      %s128 = sphi 0, %s112
    $region4: #{tpu_custom_call.1} parent=1 // loop_header_branch
      %19 = sbr.rel (%p17) target = $region8
    $region5: #{tpu_custom_call.1} parent=1 // loop_body
      %s21 = ssub.s32 %s16, 1
      %s22 = ssub.s32 %s16, 2
      %s29 = sadd.s32 1, %s24
      %p30 = scmp.ge.s32.totalorder %s29, 1
      %s31 = scalar_select %p30, 0, %s29
      %s32 = sadd.s32 1, %s23
      %s33 = scalar_select %p30, %s32, %s23
      %p34 = scmp.ge.s32.totalorder %s33, 2
      %s35 = scalar_select %p34, 0, %s33
      %s36 = ssub.s32 %s23, %s35
      %s37 = ssub.s32 %s24, %s31
      %s38 = sor.u32 %s36, %s37
      %p39 = scmp.eq.s32.totalorder %s38, 0
      %s41 = sadd.s32 %s40, 1
      %s42 = scalar_select %p39, %s40, %s41
      %p45 = pneg %p39
      %p46 = scmp.eq.s32.totalorder %s16, 1
      %p47 = por %p45, %p46
      %p48 = scmp.ne.s32.totalorder %s40, %s43
      %p49 = scmp.eq.s32.totalorder %s16, 0
      %p50 = por %p48, %p49
      %p51 = scmp.ne.s32.totalorder %s40, %s43
      %p52 = scmp.eq.s32.totalorder %s21, 1
      %p53 = por %p51, %p52
      %p54 = scmp.ne.s32.totalorder %s43, %s44
      %p55 = scmp.eq.s32.totalorder %s21, 0
      %p56 = por %p54, %p55
      %p57 = scmp.ne.s32.totalorder %s43, %s44
      %p58 = scmp.eq.s32.totalorder %s22, 1
      %p59 = por %p57, %p58
      %p61 = scmp.ne.s32.totalorder %s44, %s60
      %p62 = scmp.eq.s32.totalorder %s22, 0
      %p63 = por %p61, %p62
      %s65 = sadd.s32 %s64, 1
      %p68 = scmp.eq.s32.totalorder %s16, 1
      %p69 = scmp.ne.s32.totalorder %s64, %s66
      %p70 = scmp.eq.s32.totalorder %s16, 0
      %p71 = por %p69, %p70
      %p72 = scmp.ne.s32.totalorder %s64, %s66
      %p73 = scmp.eq.s32.totalorder %s21, 1
      %p74 = por %p72, %p73
      %p75 = scmp.ne.s32.totalorder %s66, %s67
      %p76 = scmp.eq.s32.totalorder %s21, 0
      %p77 = por %p75, %p76
      %p78 = scmp.ne.s32.totalorder %s66, %s67
      %p79 = scmp.eq.s32.totalorder %s22, 1
      %p80 = por %p78, %p79
      %p82 = scmp.ne.s32.totalorder %s67, %s81
      %p83 = scmp.eq.s32.totalorder %s22, 0
      %p84 = por %p82, %p83
      %s86 = sadd.s32 %s85, 1
      %p89 = scmp.eq.s32.totalorder %s16, 1
      %p90 = scmp.ne.s32.totalorder %s85, %s87
      %p91 = scmp.eq.s32.totalorder %s16, 0
      %p92 = por %p90, %p91
      %p93 = scmp.ne.s32.totalorder %s85, %s87
      %p94 = scmp.eq.s32.totalorder %s21, 1
      %p95 = por %p93, %p94
      %p96 = scmp.ne.s32.totalorder %s87, %s88
      %p97 = scmp.eq.s32.totalorder %s21, 0
      %p98 = por %p96, %p97
      %p99 = scmp.ne.s32.totalorder %s87, %s88
      %p100 = scmp.eq.s32.totalorder %s22, 1
      %p101 = por %p99, %p100
      %p103 = scmp.ne.s32.totalorder %s88, %s102
      %p104 = scmp.eq.s32.totalorder %s22, 0
      %p105 = por %p103, %p104
      %s106 = ssub.s32 %s23, %s35
      %p107 = scmp.eq.s32.totalorder %s106, 0
      %s109 = sadd.s32 %s108, 1
      %s110 = scalar_select %p107, %s108, %s109
      %p113 = pneg %p107
      %p114 = scmp.eq.s32.totalorder %s16, 1
      %p115 = por %p113, %p114
      %p116 = scmp.ne.s32.totalorder %s108, %s111
      %p117 = scmp.eq.s32.totalorder %s16, 0
      %p118 = por %p116, %p117
      %p119 = scmp.ne.s32.totalorder %s108, %s111
      %p120 = scmp.eq.s32.totalorder %s21, 1
      %p121 = por %p119, %p120
      %p122 = scmp.ne.s32.totalorder %s111, %s112
      %p123 = scmp.eq.s32.totalorder %s21, 0
      %p124 = por %p122, %p123
      %p125 = scmp.ne.s32.totalorder %s111, %s112
      %p126 = scmp.eq.s32.totalorder %s22, 1
      %p127 = por %p125, %p126
      %p129 = scmp.ne.s32.totalorder %s112, %s128
      %p130 = scmp.eq.s32.totalorder %s22, 0
      %p131 = por %p129, %p130
      %p132 = scmp.le.s32.totalorder 1, %s16
      %p133 = scmp.lt.s32.totalorder %s16, 3
      %p134 = pnand %p132, %p133
      %p135 = pneg %p134
      // Predicated region
      $region9: #{tpu_custom_call.1} parent=5 // pred_check
        _
      $region10: #{tpu_custom_call.1} parent=5 // pred_check_branch
        %137 = sbr.rel (%p134) target = $region12
      $region11: #{tpu_custom_call.1} parent=5 // pred_region
        %s138 = ssub.s32 %s16, 1
        // Predicated region
        $region13: #{tpu_custom_call.1} parent=11 // pred_check
          %p139 = pneg %p77
        $region14: #{tpu_custom_call.1} parent=11 // pred_check_branch
          %141 = sbr.rel (%p139) target = $region16
        $region15: #{tpu_custom_call.1} parent=11 // pred_region
          %s143 = ssub.s32 64, 64
          %144 = vsyncadd [#allocation6], %s143
          %s146 = sshll.u32 [#allocation5], 4
          %s147 = int_to_ptr.vmem [resolvable:$true] %s146
          %149 = dma.hbm_to_vmem [thread:$0]  %s1, 64, %s147, [#allocation6]
        $region16: #{tpu_custom_call.1} parent=11 // pred_fallthru
          _
        // Predicated region
        $region17: #{tpu_custom_call.1} parent=11 // pred_check
          %p150 = pneg %p98
        $region18: #{tpu_custom_call.1} parent=11 // pred_check_branch
          %152 = sbr.rel (%p150) target = $region20
        $region19: #{tpu_custom_call.1} parent=11 // pred_region
          _
        $region20: #{tpu_custom_call.1} parent=11 // pred_fallthru
          _
      $region12: #{tpu_custom_call.1} parent=5 // pred_fallthru
        _
      %p153 = scmp.lt.s32.totalorder %s16, 2
      // Predicated region
      $region21: #{tpu_custom_call.1} parent=5 // pred_check
        %p154 = pneg %p153
      $region22: #{tpu_custom_call.1} parent=5 // pred_check_branch
        %156 = sbr.rel (%p154) target = $region24
      $region23: #{tpu_custom_call.1} parent=5 // pred_region
        // Predicated region
        $region25: #{tpu_custom_call.1} parent=23 // pred_check
          %p157 = pneg %p50
        $region26: #{tpu_custom_call.1} parent=23 // pred_check_branch
          %159 = sbr.rel (%p157) target = $region28
        $region27: #{tpu_custom_call.1} parent=23 // pred_region
          %s160 = sand.u32 %s40, 1
          %s161 = scalar_lea.sflag [#allocation3], %s160
          %s162 = sand.u32 %s40, 1
          %s163 = smul.addr %s162, 8
          %s164 = scalar_lea.vmem [#allocation2], %s163
          %s165 = smul.u32 2, %s24
          %s167 = ssub.s32 128, 128
          %168 = vsyncadd %s161, %s167
          %s169 = smul.addr %s23, 2
          %s170 = sadd.s32 %s165, %s169
          %s171 = smul.addr %s170, 64
          %s172 = scalar_lea.hbm %s0, %s171
          %s174 = sshll.u32 %s164, 4
          %s175 = int_to_ptr.vmem [resolvable:$true] %s174
          %177 = dma.hbm_to_vmem [thread:$0]  %s172, 128, %s175, %s161
        $region28: #{tpu_custom_call.1} parent=23 // pred_fallthru
          _
      $region24: #{tpu_custom_call.1} parent=5 // pred_fallthru
        _
      %p178 = scmp.le.s32.totalorder 1, %s16
      %p179 = scmp.lt.s32.totalorder %s16, 3
      %p180 = pnand %p178, %p179
      %p181 = pneg %p180
      // Predicated region
      $region29: #{tpu_custom_call.1} parent=5 // pred_check
        _
      $region30: #{tpu_custom_call.1} parent=5 // pred_check_branch
        %183 = sbr.rel (%p180) target = $region32
      $region31: #{tpu_custom_call.1} parent=5 // pred_region
        %s184 = ssub.s32 %s16, 1
        %s185 = sand.u32 %s43, 1
        %s186 = scalar_lea.sflag [#allocation3], %s185
        %s187 = sand.u32 %s43, 1
        %s188 = smul.addr %s187, 8
        %s189 = scalar_lea.vmem [#allocation2], %s188
        // Predicated region
        $region33: #{tpu_custom_call.1} parent=31 // pred_check
          %p190 = pneg %p56
        $region34: #{tpu_custom_call.1} parent=31 // pred_check_branch
          %192 = sbr.rel (%p190) target = $region36
        $region35: #{tpu_custom_call.1} parent=31 // pred_region
          %193 = dma.done %s186, 128
        $region36: #{tpu_custom_call.1} parent=31 // pred_fallthru
          _
        // Predicated region
        $region37: #{tpu_custom_call.1} parent=31 // pred_check
          %p194 = pneg %p77
        $region38: #{tpu_custom_call.1} parent=31 // pred_check_branch
          %196 = sbr.rel (%p194) target = $region40
        $region39: #{tpu_custom_call.1} parent=31 // pred_region
          %197 = dma.done [#allocation6], 64
        $region40: #{tpu_custom_call.1} parent=31 // pred_fallthru
          _
        %s198 = sand.u32 %s43, 1
        %s199 = scalar_lea.sflag [#allocation3], %s198
        %s200 = sand.u32 %s43, 1
        %s201 = smul.addr %s200, 8
        %s202 = scalar_lea.vmem [#allocation2], %s201
        %p203 = pneg %p56
        %p204 = pneg %p53
        %p205 = pneg %p77
        %p206 = pneg %p74
        %p207 = pneg %p98
        %p208 = pneg %p95
        %p209 = pneg %p124
        %p210 = pneg %p121
        %s211 = sand.u32 %s111, 1
        %s212 = scalar_lea.sflag [#allocation4], %s211
        %s213 = sand.u32 %s111, 1
        %s214 = scalar_lea.vmem [#allocation7], %s213
        %s215 = smul.u32 2, %s26
        %v216 = vld [vmem:[%s189] sm:$0xff]
        %v218 = vcombine.high %v216, %v216
        %vm220 = vcmask 1043456
        %v221 = vsel %vm220, %v216, 0.0
        %v222 = vsel %vm220, %v218, 0.0
        %v223 = vadd.f32 %v221, %v222
        %224 = vadd.xlane.f32.xlu0 %v223
        %v225 = vpop.xlane.xlu0 %224
        %v226 = vmul.f32 %v225, 0.00390625
        %v227 = vld [vmem:[#allocation5] sm:$0xf]
        %v228 = vld [vmem:[%s2] sm:$0x1]
        %v230 = vlaneseq
        %v231 = vand.u32 %v230, 127
        %v232 = vlaneseq
        %v233 = vshrl.u32 %v232, 7
        %v234 = vsub.s32 %v231, %v233
        %v235 = vrot.slane %v226, %v234
        %vm236 = vcmask 31744
        %v237 = vsel %vm236, %v235, 0
        %v240 = vsel %vm220, %v227, 0
        %242 = vmatprep.subr.mxu0 0.0
        %243 = vmatpush1.msra.mxu0 %v240
        %244 = vmatprep.subr.mxu0 0.0
        %245 = vmatpush1.msra.mxu0 0.0
        %246 = vmatprep.subr.mxu0 0.0
        %247 = vmatpush1.msra.mxu0 0.0
        %248 = vmatprep.subr.mxu0 0.0
        %249 = vmatpush1.msra.mxu0 0.0
        %250 = vmatprep.subr.mxu0 0.0
        %251 = vmatpush1.msra.mxu0 0.0
        %252 = vmatprep.subr.mxu0 0.0
        %253 = vmatpush1.msra.mxu0 0.0
        %254 = vmatprep.subr.mxu0 0.0
        %255 = vmatpush1.msra.mxu0 0.0
        %256 = vmatprep.subr.mxu0 0.0
        %257 = vmatpush1.msra.mxu0 0.0
        %258 = vmatprep.subr.mxu0 0.0
        %259 = vmatpush1.msra.mxu0 0.0
        %260 = vmatprep.subr.mxu0 0.0
        %261 = vmatpush1.msra.mxu0 0.0
        %262 = vmatprep.subr.mxu0 0.0
        %263 = vmatpush1.msra.mxu0 0.0
        %264 = vmatprep.subr.mxu0 0.0
        %265 = vmatpush1.msra.mxu0 0.0
        %266 = vmatprep.subr.mxu0 0.0
        %267 = vmatpush1.msra.mxu0 0.0
        %268 = vmatprep.subr.mxu0 0.0
        %269 = vmatpush1.msra.mxu0 0.0
        %270 = vmatprep.subr.mxu0 0.0
        %271 = vmatpush1.msra.mxu0 0.0
        %272 = vmatprep.subr.mxu0 0.0
        %273 = vmatpush1.msra.mxu0 0.0
        %274 = vmatprep.subr.mxu0 0.0
        %275 = vmatpush1.msra.mxu0 0.0
        %276 = vmatprep.subr.mxu0 0.0
        %277 = vmatpush1.msra.mxu0 0.0
        %278 = vmatprep.subr.mxu0 0.0
        %279 = vmatpush1.msra.mxu0 0.0
        %280 = vmatprep.subr.mxu0 0.0
        %281 = vmatpush1.msra.mxu0 0.0
        %282 = vmatprep.subr.mxu0 0.0
        %283 = vmatpush1.msra.mxu0 0.0
        %284 = vmatprep.subr.mxu0 0.0
        %285 = vmatpush1.msra.mxu0 0.0
        %286 = vmatprep.subr.mxu0 0.0
        %287 = vmatpush1.msra.mxu0 0.0
        %288 = vmatprep.subr.mxu0 0.0
        %289 = vmatpush1.msra.mxu0 0.0
        %290 = vmatprep.subr.mxu0 0.0
        %291 = vmatpush1.msra.mxu0 0.0
        %292 = vmatprep.subr.mxu0 0.0
        %293 = vmatpush1.msra.mxu0 0.0
        %294 = vmatprep.subr.mxu0 0.0
        %295 = vmatpush1.msra.mxu0 0.0
        %296 = vmatprep.subr.mxu0 0.0
        %297 = vmatpush1.msra.mxu0 0.0
        %298 = vmatprep.subr.mxu0 0.0
        %299 = vmatpush1.msra.mxu0 0.0
        %300 = vmatprep.subr.mxu0 0.0
        %301 = vmatpush1.msra.mxu0 0.0
        %302 = vmatprep.subr.mxu0 0.0
        %303 = vmatpush1.msra.mxu0 0.0
        %304 = vmatprep.subr.mxu0 0.0
        %305 = vmatpush1.msra.mxu0 0.0
        %306 = vmatprep.mubr.f32.mxu0 0.0
        %307 = vmatmul.mubr.f32.gmra.mrb[0].mxu0 %v237
        %v308 = vpop.f32.mrb[0].mxu0
        %v309 = vadd.f32 %v228, %v308
        %v310 = vpop.f32.mrb[0].mxu0
        %311 = vdwg.mxu0
        %312 = vst [vmem:[%s214] sm:$0x1] %v309
        %s313 = sand.u32 %s111, 1
        %s314 = scalar_lea.sflag [#allocation4], %s313
        %s315 = sand.u32 %s111, 1
        %s316 = scalar_lea.vmem [#allocation7], %s315
        // Predicated region
        $region41: #{tpu_custom_call.1} parent=31 // pred_check
          %p317 = pneg %p121
        $region42: #{tpu_custom_call.1} parent=31 // pred_check_branch
          %319 = sbr.rel (%p317) target = $region44
        $region43: #{tpu_custom_call.1} parent=31 // pred_region
          %s321 = ssub.s32 16, 16
          %322 = vsyncadd %s314, %s321
          %s323 = smul.addr %s25, 16
          %s324 = scalar_lea.hbm %s3, %s323
          %s326 = sshll.u32 %s316, 4
          %s327 = int_to_ptr.vmem [resolvable:$true] %s326
          %329 = dma.vmem_to_hbm [thread:$0]  %s327, 16, %s324, %s314
        $region44: #{tpu_custom_call.1} parent=31 // pred_fallthru
          _
      $region32: #{tpu_custom_call.1} parent=5 // pred_fallthru
        _
      %p330 = scmp.le.s32.totalorder 2, %s16
      // Predicated region
      $region45: #{tpu_custom_call.1} parent=5 // pred_check
        %p331 = pneg %p330
      $region46: #{tpu_custom_call.1} parent=5 // pred_check_branch
        %333 = sbr.rel (%p331) target = $region48
      $region47: #{tpu_custom_call.1} parent=5 // pred_region
        %s334 = ssub.s32 %s16, 2
        // Predicated region
        $region49: #{tpu_custom_call.1} parent=47 // pred_check
          %p335 = pneg %p127
        $region50: #{tpu_custom_call.1} parent=47 // pred_check_branch
          %337 = sbr.rel (%p335) target = $region52
        $region51: #{tpu_custom_call.1} parent=47 // pred_region
          %s338 = sand.u32 %s112, 1
          %s339 = scalar_lea.sflag [#allocation4], %s338
          %s340 = sand.u32 %s112, 1
          %s341 = scalar_lea.vmem [#allocation7], %s340
          %342 = dma.done %s339, 16
        $region52: #{tpu_custom_call.1} parent=47 // pred_fallthru
          _
      $region48: #{tpu_custom_call.1} parent=5 // pred_fallthru
        _
    $region6: #{tpu_custom_call.1} parent=1 // loop_footer
      %s20 = sadd.s32 1, %s16
    $region7: #{tpu_custom_call.1} parent=1 // loop_footer_branch
      %15 = sbr.rel target = $region3
    $region8: #{tpu_custom_call.1} parent=1 // loop_exit
      _
    %343 = vsyncpa [#allocation3], 1
    %s344 = scalar_lea.sflag [#allocation3], 1
    %345 = vsyncpa %s344, 1
    %346 = vsyncpa [#allocation6], 1
    %347 = vsyncpa [#allocation4], 1
    %s348 = scalar_lea.sflag [#allocation4], 1
    %349 = vsyncpa %s348, 1

</llo_original>
